<compile_context>
chip_gen: v5e
topology: v5e:2x2
jax: 0.10.0
libtpu: 0.0.40
codegen_flags: <defaults>
</compile_context>

<pallas_src>
import math
from functools import partial
from typing import NamedTuple

import jax
import jax.numpy as jnp
from jax.experimental import pallas as pl
from jax.experimental.pallas import tpu as pltpu


def _round_up(x, m):
    return ((x + m - 1) // m) * m


def _cdiv(a, b):
    return (a + b - 1) // b


class TwoBranchMeta(NamedTuple):
    hidden_dim: int
    output_dim: int
    half_pad: int
    h_pad: int
    o_pad: int


# --------------------------------------------------------------------------------------
# Kernel
# --------------------------------------------------------------------------------------
def two_branch_kernel(x12_ref, freqs_ref,
                      w1_ref, b1_ref, w2_ref, b2_ref, w3_ref, b3_ref,
                      wm_sin_ref, wm_cos_ref, wm_h_ref, bm_ref, out_ref):
    x1 = x12_ref[:, 0:1]        # [TB, 1] time steps
    x2 = x12_ref[:, 1:2]        # [TB, 1] condition

    # ---- Branch 1 (sinusoidal embedding) + its merge contribution FIRST --------------
    # Accumulating the sin/cos dots immediately kills those temporaries before the two
    # HxH matmuls run (less live f32 => less vreg spill traffic).
    emb = x1 * freqs_ref[...]                                        # [TB, half_pad]
    wm_sin = wm_sin_ref[...]
    wm_cos = wm_cos_ref[...]
    y = (jnp.dot(jnp.sin(emb).astype(wm_sin.dtype), wm_sin,
                 preferred_element_type=jnp.float32)
         + jnp.dot(jnp.cos(emb).astype(wm_cos.dtype), wm_cos,
                   preferred_element_type=jnp.float32)
         + bm_ref[...])                                              # [TB, O_pad] f32

    # ---- Branch 2: Linear(1,H) -> ReLU -> Linear(H,H) -> ReLU -> Linear(H,H) ---------
    # K=1 first layer is a broadcast multiply on the VPU (f32), not a degenerate matmul.
    h = jnp.maximum(x2 * w1_ref[...] + b1_ref[...], 0.0)            # [TB, H_pad]
    w2 = w2_ref[...]
    h = jnp.maximum(
        jnp.dot(h.astype(w2.dtype), w2, preferred_element_type=jnp.float32)
        + b2_ref[...], 0.0)
    w3 = w3_ref[...]
    out2 = (jnp.dot(h.astype(w3.dtype), w3, preferred_element_type=jnp.float32)
            + b3_ref[...])

    # ---- Merge head remainder + ReLU --------------------------------------------------
    wm_h = wm_h_ref[...]
    y = y + jnp.dot(out2.astype(wm_h.dtype), wm_h,
                    preferred_element_type=jnp.float32)
    out_ref[...] = jnp.maximum(y, 0.0)                               # [TB, O_pad]


# --------------------------------------------------------------------------------------
# One-time parameter preparation (hoisted out of the per-call path)
# --------------------------------------------------------------------------------------
def prepare_params(raw_params, *, mxu_dtype=jnp.float32):
    """Split/pad/cast the raw parameters once. Returns (arrays, meta)."""
    (freqs, w1, b1, w2, b2, w3, b3, wm, bm) = raw_params
    hidden_dim = w1.shape[1]
    output_dim = wm.shape[1]
    assert hidden_dim % 2 == 0 and hidden_dim >= 4, "hidden_dim must be even and >= 4"
    half = hidden_dim // 2

    half_pad = _round_up(half, 128)
    h_pad = _round_up(hidden_dim, 128)
    o_pad = _round_up(output_dim, 128)

    def pad2(a, rows, cols):
        return jnp.pad(a, ((0, rows - a.shape[0]), (0, cols - a.shape[1])))

    # Zero padding is exact: padded hidden lanes carry 0 (ReLU(0)=0), padded sin lanes
    # are sin(0)=0, and padded cos lanes (cos(0)=1) hit zero-padded wm_cos rows.
    freqs_p = pad2(freqs.reshape(1, half), 1, half_pad)
    w1_p = pad2(w1, 1, h_pad)
    b1_p = pad2(b1, 1, h_pad)
    w2_p = pad2(w2, h_pad, h_pad).astype(mxu_dtype)
    b2_p = pad2(b2, 1, h_pad)
    w3_p = pad2(w3, h_pad, h_pad).astype(mxu_dtype)
    b3_p = pad2(b3, 1, h_pad)
    wm_sin = pad2(wm[:half], half_pad, o_pad).astype(mxu_dtype)
    wm_cos = pad2(wm[half:hidden_dim], half_pad, o_pad).astype(mxu_dtype)
    wm_h = pad2(wm[hidden_dim:], h_pad, o_pad).astype(mxu_dtype)
    bm_p = pad2(bm, 1, o_pad)

    arrays = (freqs_p, w1_p, b1_p, w2_p, b2_p, w3_p, b3_p,
              wm_sin, wm_cos, wm_h, bm_p)
    meta = TwoBranchMeta(hidden_dim, output_dim, half_pad, h_pad, o_pad)
    return arrays, meta


def _choose_batch_tiling(batch, block_batch):
    """Balanced batch tiles; grid >= 2 when batch allows (v7x megacore + pipelining)."""
    min_tile = 8
    n_tiles = max(_cdiv(batch, block_batch), 1)
    if batch >= 2 * min_tile:
        n_tiles = max(n_tiles, 2)
    n_tiles = min(n_tiles, _cdiv(batch, min_tile))
    tb = _round_up(_cdiv(batch, n_tiles), min_tile)
    b_pad = _round_up(batch, tb)
    return tb, b_pad


# --------------------------------------------------------------------------------------
# Forward wrapper
# --------------------------------------------------------------------------------------
@partial(jax.jit, static_argnames=("meta", "block_batch", "slice_output"))
def two_branch_net(x1, x2, arrays, meta, *, block_batch=512, slice_output=True):
    """x1, x2: [batch, 1] float32. Returns [batch, output_dim] float32."""
    (freqs_p, w1_p, b1_p, w2_p, b2_p, w3_p, b3_p,
     wm_sin, wm_cos, wm_h, bm_p) = arrays
    batch = x1.shape[0]
    tb, b_pad = _choose_batch_tiling(batch, block_batch)
    o_pad, h_pad, half_pad = meta.o_pad, meta.h_pad, meta.half_pad

    # Pack x1/x2 into one [B, 2] stream (single input DMA per tile) and pad the batch.
    x12 = jnp.concatenate([x1.reshape(batch, 1), x2.reshape(batch, 1)], axis=1)
    if b_pad != batch:
        x12 = jnp.pad(x12, ((0, b_pad - batch), (0, 0)))

    grid = (b_pad // tb,)

    def const_spec(a):
        # Grid-invariant weights/biases: single-buffered (no double-buffer VMEM waste).
        return pl.BlockSpec(a.shape, lambda i: (0, 0), pipeline_mode=pl.Buffered(1))

    weight_arrays = (freqs_p, w1_p, b1_p, w2_p, b2_p, w3_p, b3_p,
                     wm_sin, wm_cos, wm_h, bm_p)
    weight_bytes = sum(int(a.size) * a.dtype.itemsize for a in weight_arrays)
    io_bytes = 2 * (tb * 2 * 4) + 2 * (tb * o_pad * 4)          # double-buffered x12/out
    tmp_bytes = 8 * tb * max(h_pad, half_pad, o_pad) * 4        # live intermediates
    vmem_limit = int(min(max(weight_bytes + io_bytes + tmp_bytes + (2 << 20), 32 << 20),
                         64 << 20))
    # TODO(synk): for hidden_dim >~ 2k in f32 the resident weights exceed v7x's 64 MiB
    # VMEM; use prepare_params(..., mxu_dtype=jnp.bfloat16) or add a hidden-dim
    # reduction grid axis with an f32 accumulator.

    flops = 2 * b_pad * (2 * h_pad * h_pad + (2 * half_pad + h_pad) * o_pad)
    cost = pl.CostEstimate(
        flops=int(flops),
        transcendentals=int(2 * b_pad * half_pad),
        bytes_accessed=int(weight_bytes + b_pad * (2 + o_pad) * 4),
    )

    out = pl.pallas_call(
        two_branch_kernel,
        out_shape=jax.ShapeDtypeStruct((b_pad, o_pad), jnp.float32),
        grid=grid,
        in_specs=[
            pl.BlockSpec((tb, 2), lambda i: (i, 0)),   # packed x1/x2 batch tile
            const_spec(freqs_p),
            const_spec(w1_p), const_spec(b1_p),
            const_spec(w2_p), const_spec(b2_p),
            const_spec(w3_p), const_spec(b3_p),
            const_spec(wm_sin), const_spec(wm_cos), const_spec(wm_h),
            const_spec(bm_p),
        ],
        out_specs=pl.BlockSpec((tb, o_pad), lambda i: (i, 0)),
        compiler_params=pltpu.CompilerParams(
            dimension_semantics=("parallel",),         # batch tiles across TCs (v7x)
            vmem_limit_bytes=vmem_limit,
        ),
        cost_estimate=cost,
    )(x12, freqs_p, w1_p, b1_p, w2_p, b2_p, w3_p, b3_p,
      wm_sin, wm_cos, wm_h, bm_p)

    if slice_output:
        return out[:batch, :meta.output_dim]
    # Padded [b_pad, o_pad] result (valid data in [:batch, :output_dim]); lets consumers
    # skip the extra HBM copy of the slice at large batch.
    return out


# --------------------------------------------------------------------------------------
# Parameter init (PyTorch-style) + pure-JAX reference
# --------------------------------------------------------------------------------------
def init_params(key, hidden_dim, output_dim):
    """Deterministic PyTorch-style (uniform +-1/sqrt(fan_in)) init. Raw, unpadded."""
    def linear(key, fan_in, fan_out):
        kw, kb = jax.random.split(key)
        bound = 1.0 / math.sqrt(fan_in)
        w = jax.random.uniform(kw, (fan_in, fan_out), jnp.float32, -bound, bound)
        b = jax.random.uniform(kb, (1, fan_out), jnp.float32, -bound, bound)
        return w, b

    k1, k2, k3, km = jax.random.split(key, 4)
    w1, b1 = linear(k1, 1, hidden_dim)
    w2, b2 = linear(k2, hidden_dim, hidden_dim)
    w3, b3 = linear(k3, hidden_dim, hidden_dim)
    wm, bm = linear(km, 2 * hidden_dim, output_dim)

    half_dim = hidden_dim // 2
    emb_scale = math.log(10000.0) / (half_dim - 1)
    freqs = jnp.exp(jnp.arange(half_dim, dtype=jnp.float32) * -emb_scale)
    freqs = freqs.reshape(1, half_dim)

    return (freqs, w1, b1, w2, b2, w3, b3, wm, bm)


def reference_forward(x1, x2, raw_params):
    """Pure-JAX reference mirroring the PyTorch forward exactly."""
    (freqs, w1, b1, w2, b2, w3, b3, wm, bm) = raw_params
    emb = x1 * freqs
    out1 = jnp.concatenate([jnp.sin(emb), jnp.cos(emb)], -1)
    h = jnp.maximum(x2 @ w1 + b1, 0.0)
    h = jnp.maximum(h @ w2 + b2, 0.0)
    out2 = h @ w3 + b3
    merged = jnp.concatenate([out1, out2], -1)
    return jnp.maximum(merged @ wm + bm, 0.0)


if __name__ == "__main__":
    batch = 2
    hidden_dim = 32
    output_dim = 4

    key = jax.random.PRNGKey(0)
    k_params, k_x1, k_x2 = jax.random.split(key, 3)

    raw_params = init_params(k_params, hidden_dim, output_dim)
    x1 = jax.random.uniform(k_x1, (batch, 1), jnp.float32, 0.0, 100.0)   # time steps
    x2 = jax.random.normal(k_x2, (batch, 1), jnp.float32)                # condition

    ref = reference_forward(x1, x2, raw_params)

    # f32 MXU path (matches the f32 reference tightly).
    arrays_f32, meta = prepare_params(raw_params)
    out = jax.block_until_ready(two_branch_net(x1, x2, arrays_f32, meta))
    assert out.shape == (batch, output_dim), out.shape
    assert jnp.allclose(out, ref, atol=1e-5, rtol=1e-5), (out, ref)

    # bf16 MXU path (2x MXU throughput, half the resident weight VMEM); looser tolerance.
    arrays_bf16, meta_bf16 = prepare_params(raw_params, mxu_dtype=jnp.bfloat16)
    out_bf16 = jax.block_until_ready(two_branch_net(x1, x2, arrays_bf16, meta_bf16))
    assert out_bf16.shape == (batch, output_dim), out_bf16.shape
    assert jnp.allclose(out_bf16, ref, atol=5e-2, rtol=5e-2), (out_bf16, ref)

    print("KERNEL_OK")
</pallas_src>

<mosaic_0001>
module attributes {stable_mosaic.version = 11 : i64} {
  func.func @two_branch_kernel(%arg0: i32, %arg1: memref<8x2xf32, #tpu.memory_space<vmem>>, %arg2: memref<1x128xf32, #tpu.memory_space<vmem>>, %arg3: memref<1x128xf32, #tpu.memory_space<vmem>>, %arg4: memref<1x128xf32, #tpu.memory_space<vmem>>, %arg5: memref<128x128xf32, #tpu.memory_space<vmem>>, %arg6: memref<1x128xf32, #tpu.memory_space<vmem>>, %arg7: memref<128x128xf32, #tpu.memory_space<vmem>>, %arg8: memref<1x128xf32, #tpu.memory_space<vmem>>, %arg9: memref<128x128xf32, #tpu.memory_space<vmem>>, %arg10: memref<128x128xf32, #tpu.memory_space<vmem>>, %arg11: memref<128x128xf32, #tpu.memory_space<vmem>>, %arg12: memref<1x128xf32, #tpu.memory_space<vmem>>, %arg13: memref<8x128xf32, #tpu.memory_space<vmem>>) attributes {dimension_semantics = [#tpu.dimension_semantics<parallel>], iteration_bounds = array<i64: 1>, scalar_prefetch = 0 : i64, scratch_operands = 0 : i64, tpu.core_type = #tpu.core_type<tc>, window_params = [{transform_indices = @transform_0, window_bounds = array<i64: 8, 2>}, {pipeline_mode = #tpu.pipeline_mode<synchronous>, transform_indices = @transform_1, window_bounds = array<i64: 1, 128>}, {pipeline_mode = #tpu.pipeline_mode<synchronous>, transform_indices = @transform_2, window_bounds = array<i64: 1, 128>}, {pipeline_mode = #tpu.pipeline_mode<synchronous>, transform_indices = @transform_3, window_bounds = array<i64: 1, 128>}, {pipeline_mode = #tpu.pipeline_mode<synchronous>, transform_indices = @transform_4, window_bounds = array<i64: 128, 128>}, {pipeline_mode = #tpu.pipeline_mode<synchronous>, transform_indices = @transform_5, window_bounds = array<i64: 1, 128>}, {pipeline_mode = #tpu.pipeline_mode<synchronous>, transform_indices = @transform_6, window_bounds = array<i64: 128, 128>}, {pipeline_mode = #tpu.pipeline_mode<synchronous>, transform_indices = @transform_7, window_bounds = array<i64: 1, 128>}, {pipeline_mode = #tpu.pipeline_mode<synchronous>, transform_indices = @transform_8, window_bounds = array<i64: 128, 128>}, {pipeline_mode = #tpu.pipeline_mode<synchronous>, transform_indices = @transform_9, window_bounds = array<i64: 128, 128>}, {pipeline_mode = #tpu.pipeline_mode<synchronous>, transform_indices = @transform_10, window_bounds = array<i64: 128, 128>}, {pipeline_mode = #tpu.pipeline_mode<synchronous>, transform_indices = @transform_11, window_bounds = array<i64: 1, 128>}, {transform_indices = @transform_12, window_bounds = array<i64: 8, 128>}]} {
    %c0 = arith.constant 0 : index
    %c0_0 = arith.constant 0 : index
    %0 = vector.load %arg1[%c0, %c0_0] : memref<8x2xf32, #tpu.memory_space<vmem>>, vector<8x1xf32>
    %c0_1 = arith.constant 0 : index
    %c1 = arith.constant 1 : index
    %1 = vector.load %arg1[%c0_1, %c1] : memref<8x2xf32, #tpu.memory_space<vmem>>, vector<8x1xf32>
    %c0_2 = arith.constant 0 : index
    %c0_3 = arith.constant 0 : index
    %2 = vector.load %arg2[%c0_2, %c0_3] : memref<1x128xf32, #tpu.memory_space<vmem>>, vector<1x128xf32>
    %3 = vector.broadcast %0 : vector<8x1xf32> to vector<8x128xf32>
    %4 = vector.broadcast %2 : vector<1x128xf32> to vector<8x128xf32>
    %5 = arith.mulf %3, %4 : vector<8x128xf32>
    %c0_4 = arith.constant 0 : index
    %c0_5 = arith.constant 0 : index
    %6 = vector.load %arg9[%c0_4, %c0_5] : memref<128x128xf32, #tpu.memory_space<vmem>>, vector<128x128xf32>
    %c0_6 = arith.constant 0 : index
    %c0_7 = arith.constant 0 : index
    %7 = vector.load %arg10[%c0_6, %c0_7] : memref<128x128xf32, #tpu.memory_space<vmem>>, vector<128x128xf32>
    %8 = math.sin %5 : vector<8x128xf32>
    %cst = arith.constant dense<0.000000e+00> : vector<8x128xf32>
    %9 = tpu.matmul %8, %6, %cst {dimension_numbers = #tpu.dot_dimension_numbers<[1], [0], [0], [1], [0, 0, 1, 1], [], []>} : vector<8x128xf32>, vector<128x128xf32>, vector<8x128xf32> -> vector<8x128xf32>
    %10 = math.cos %5 : vector<8x128xf32>
    %cst_8 = arith.constant dense<0.000000e+00> : vector<8x128xf32>
    %11 = tpu.matmul %10, %7, %cst_8 {dimension_numbers = #tpu.dot_dimension_numbers<[1], [0], [0], [1], [0, 0, 1, 1], [], []>} : vector<8x128xf32>, vector<128x128xf32>, vector<8x128xf32> -> vector<8x128xf32>
    %12 = arith.addf %9, %11 : vector<8x128xf32>
    %c0_9 = arith.constant 0 : index
    %c0_10 = arith.constant 0 : index
    %13 = vector.load %arg12[%c0_9, %c0_10] : memref<1x128xf32, #tpu.memory_space<vmem>>, vector<1x128xf32>
    %14 = vector.broadcast %13 : vector<1x128xf32> to vector<8x128xf32>
    %15 = arith.addf %12, %14 : vector<8x128xf32>
    %c0_11 = arith.constant 0 : index
    %c0_12 = arith.constant 0 : index
    %16 = vector.load %arg3[%c0_11, %c0_12] : memref<1x128xf32, #tpu.memory_space<vmem>>, vector<1x128xf32>
    %17 = vector.broadcast %1 : vector<8x1xf32> to vector<8x128xf32>
    %18 = vector.broadcast %16 : vector<1x128xf32> to vector<8x128xf32>
    %19 = arith.mulf %17, %18 : vector<8x128xf32>
    %c0_13 = arith.constant 0 : index
    %c0_14 = arith.constant 0 : index
    %20 = vector.load %arg4[%c0_13, %c0_14] : memref<1x128xf32, #tpu.memory_space<vmem>>, vector<1x128xf32>
    %21 = vector.broadcast %20 : vector<1x128xf32> to vector<8x128xf32>
    %22 = arith.addf %19, %21 : vector<8x128xf32>
    %cst_15 = arith.constant 0.000000e+00 : f32
    %23 = vector.broadcast %cst_15 : f32 to vector<8x128xf32>
    %24 = arith.maximumf %22, %23 : vector<8x128xf32>
    %c0_16 = arith.constant 0 : index
    %c0_17 = arith.constant 0 : index
    %25 = vector.load %arg5[%c0_16, %c0_17] : memref<128x128xf32, #tpu.memory_space<vmem>>, vector<128x128xf32>
    %cst_18 = arith.constant dense<0.000000e+00> : vector<8x128xf32>
    %26 = tpu.matmul %24, %25, %cst_18 {dimension_numbers = #tpu.dot_dimension_numbers<[1], [0], [0], [1], [0, 0, 1, 1], [], []>} : vector<8x128xf32>, vector<128x128xf32>, vector<8x128xf32> -> vector<8x128xf32>
    %c0_19 = arith.constant 0 : index
    %c0_20 = arith.constant 0 : index
    %27 = vector.load %arg6[%c0_19, %c0_20] : memref<1x128xf32, #tpu.memory_space<vmem>>, vector<1x128xf32>
    %28 = vector.broadcast %27 : vector<1x128xf32> to vector<8x128xf32>
    %29 = arith.addf %26, %28 : vector<8x128xf32>
    %cst_21 = arith.constant 0.000000e+00 : f32
    %30 = vector.broadcast %cst_21 : f32 to vector<8x128xf32>
    %31 = arith.maximumf %29, %30 : vector<8x128xf32>
    %c0_22 = arith.constant 0 : index
    %c0_23 = arith.constant 0 : index
    %32 = vector.load %arg7[%c0_22, %c0_23] : memref<128x128xf32, #tpu.memory_space<vmem>>, vector<128x128xf32>
    %cst_24 = arith.constant dense<0.000000e+00> : vector<8x128xf32>
    %33 = tpu.matmul %31, %32, %cst_24 {dimension_numbers = #tpu.dot_dimension_numbers<[1], [0], [0], [1], [0, 0, 1, 1], [], []>} : vector<8x128xf32>, vector<128x128xf32>, vector<8x128xf32> -> vector<8x128xf32>
    %c0_25 = arith.constant 0 : index
    %c0_26 = arith.constant 0 : index
    %34 = vector.load %arg8[%c0_25, %c0_26] : memref<1x128xf32, #tpu.memory_space<vmem>>, vector<1x128xf32>
    %35 = vector.broadcast %34 : vector<1x128xf32> to vector<8x128xf32>
    %36 = arith.addf %33, %35 : vector<8x128xf32>
    %c0_27 = arith.constant 0 : index
    %c0_28 = arith.constant 0 : index
    %37 = vector.load %arg11[%c0_27, %c0_28] : memref<128x128xf32, #tpu.memory_space<vmem>>, vector<128x128xf32>
    %cst_29 = arith.constant dense<0.000000e+00> : vector<8x128xf32>
    %38 = tpu.matmul %36, %37, %cst_29 {dimension_numbers = #tpu.dot_dimension_numbers<[1], [0], [0], [1], [0, 0, 1, 1], [], []>} : vector<8x128xf32>, vector<128x128xf32>, vector<8x128xf32> -> vector<8x128xf32>
    %39 = arith.addf %15, %38 : vector<8x128xf32>
    %cst_30 = arith.constant 0.000000e+00 : f32
    %40 = vector.broadcast %cst_30 : f32 to vector<8x128xf32>
    %41 = arith.maximumf %39, %40 : vector<8x128xf32>
    %c0_31 = arith.constant 0 : index
    %c0_32 = arith.constant 0 : index
    %42 = vector.load %arg13[%c0_31, %c0_32] : memref<8x128xf32, #tpu.memory_space<vmem>>, vector<8x128xf32>
    tpu.vector_store %arg13[%c0_31, %c0_32], %41 {strides = array<i32>} : memref<8x128xf32, #tpu.memory_space<vmem>>, vector<8x128xf32>,
    return
  }
  func.func @transform_0(%arg0: i32) -> (i32, i32) {
    %c0_i32 = arith.constant 0 : i32
    %c0_i32_0 = arith.constant 0 : i32
    return %arg0, %c0_i32 : i32, i32
  }
  func.func @transform_1(%arg0: i32) -> (i32, i32) {
    %c0_i32 = arith.constant 0 : i32
    %c0_i32_0 = arith.constant 0 : i32
    %c0_i32_1 = arith.constant 0 : i32
    return %c0_i32, %c0_i32_0 : i32, i32
  }
  func.func @transform_2(%arg0: i32) -> (i32, i32) {
    %c0_i32 = arith.constant 0 : i32
    %c0_i32_0 = arith.constant 0 : i32
    %c0_i32_1 = arith.constant 0 : i32
    return %c0_i32, %c0_i32_0 : i32, i32
  }
  func.func @transform_3(%arg0: i32) -> (i32, i32) {
    %c0_i32 = arith.constant 0 : i32
    %c0_i32_0 = arith.constant 0 : i32
    %c0_i32_1 = arith.constant 0 : i32
    return %c0_i32, %c0_i32_0 : i32, i32
  }
  func.func @transform_4(%arg0: i32) -> (i32, i32) {
    %c0_i32 = arith.constant 0 : i32
    %c0_i32_0 = arith.constant 0 : i32
    %c0_i32_1 = arith.constant 0 : i32
    return %c0_i32, %c0_i32_0 : i32, i32
  }
  func.func @transform_5(%arg0: i32) -> (i32, i32) {
    %c0_i32 = arith.constant 0 : i32
    %c0_i32_0 = arith.constant 0 : i32
    %c0_i32_1 = arith.constant 0 : i32
    return %c0_i32, %c0_i32_0 : i32, i32
  }
  func.func @transform_6(%arg0: i32) -> (i32, i32) {
    %c0_i32 = arith.constant 0 : i32
    %c0_i32_0 = arith.constant 0 : i32
    %c0_i32_1 = arith.constant 0 : i32
    return %c0_i32, %c0_i32_0 : i32, i32
  }
  func.func @transform_7(%arg0: i32) -> (i32, i32) {
    %c0_i32 = arith.constant 0 : i32
    %c0_i32_0 = arith.constant 0 : i32
    %c0_i32_1 = arith.constant 0 : i32
    return %c0_i32, %c0_i32_0 : i32, i32
  }
  func.func @transform_8(%arg0: i32) -> (i32, i32) {
    %c0_i32 = arith.constant 0 : i32
    %c0_i32_0 = arith.constant 0 : i32
    %c0_i32_1 = arith.constant 0 : i32
    return %c0_i32, %c0_i32_0 : i32, i32
  }
  func.func @transform_9(%arg0: i32) -> (i32, i32) {
    %c0_i32 = arith.constant 0 : i32
    %c0_i32_0 = arith.constant 0 : i32
    %c0_i32_1 = arith.constant 0 : i32
    return %c0_i32, %c0_i32_0 : i32, i32
  }
  func.func @transform_10(%arg0: i32) -> (i32, i32) {
    %c0_i32 = arith.constant 0 : i32
    %c0_i32_0 = arith.constant 0 : i32
    %c0_i32_1 = arith.constant 0 : i32
    return %c0_i32, %c0_i32_0 : i32, i32
  }
  func.func @transform_11(%arg0: i32) -> (i32, i32) {
    %c0_i32 = arith.constant 0 : i32
    %c0_i32_0 = arith.constant 0 : i32
    %c0_i32_1 = arith.constant 0 : i32
    return %c0_i32, %c0_i32_0 : i32, i32
  }
  func.func @transform_12(%arg0: i32) -> (i32, i32) {
    %c0_i32 = arith.constant 0 : i32
    %c0_i32_0 = arith.constant 0 : i32
    return %arg0, %c0_i32 : i32, i32
  }
}

</mosaic_0001>

<llo_original>
// kernel: two_branch_net.1
$region0: #{two_branch_net.1}
  #allocation0 [shape = 'u32[]', space=smem, size = 0x4, offset = 0x4, fixed_abs, tag = 'smem constant byte address 0x4 - core index']
  #allocation1 [shape = 'u32[72,128]{1,0:T(1,128)}', space=vmem, size = 0x9000, scoped, tag = 'internal scratch']
  %s0 = inlined_call_operand.vmem [shape: f32[8,2], index: 0, kind: input, shape index: {}]
  %s1 = inlined_call_operand.vmem [shape: f32[1,128], index: 1, kind: input, shape index: {}]
  %s2 = inlined_call_operand.vmem [shape: f32[1,128], index: 2, kind: input, shape index: {}]
  %s3 = inlined_call_operand.vmem [shape: f32[1,128], index: 3, kind: input, shape index: {}]
  %s4 = inlined_call_operand.hbm [shape: f32[128,128], index: 4, kind: input, shape index: {}]
  %s5 = inlined_call_operand.vmem [shape: f32[1,128], index: 5, kind: input, shape index: {}]
  %s6 = inlined_call_operand.hbm [shape: f32[128,128], index: 6, kind: input, shape index: {}]
  %s7 = inlined_call_operand.vmem [shape: f32[1,128], index: 7, kind: input, shape index: {}]
  %s8 = inlined_call_operand.hbm [shape: f32[128,128], index: 8, kind: input, shape index: {}]
  %s9 = inlined_call_operand.hbm [shape: f32[128,128], index: 9, kind: input, shape index: {}]
  %s10 = inlined_call_operand.hbm [shape: f32[128,128], index: 10, kind: input, shape index: {}]
  %s11 = inlined_call_operand.vmem [shape: f32[1,128], index: 11, kind: input, shape index: {}]
  %s12 = inlined_call_operand.vmem [shape: f32[8,128], index: 12, kind: output, shape index: {}]
  %s13 = sld [smem:[#allocation0]]
  $region78: #{two_branch_net.1} parent=0
    _
  %s15 = ssub.s32 1, %s13
  %s16 = scalar_select 0, %s15, %s13
  $region1: #{two_branch_net.1} parent=0
    #allocation2 [shape = 'u8[65536]{0}', space=vmem, size = 0x10000, scoped, tag = 'input window, operand 4, single buffered']
    #allocation3 [shape = 's32[1]{0}', space=sflag, size = 0x4, scoped, tag = 'scoped memory for two_branch_net.1']
    #allocation4 [shape = 'u8[65536]{0}', space=vmem, size = 0x10000, scoped, tag = 'input window, operand 6, single buffered']
    #allocation5 [shape = 's32[1]{0}', space=sflag, size = 0x4, scoped, tag = 'scoped memory for two_branch_net.1']
    #allocation6 [shape = 'u8[65536]{0}', space=vmem, size = 0x10000, scoped, tag = 'input window, operand 8, single buffered']
    #allocation7 [shape = 'u8[65536]{0}', space=vmem, size = 0x10000, scoped, tag = 'input window, operand 9, single buffered']
    #allocation8 [shape = 's32[1]{0}', space=sflag, size = 0x4, scoped, tag = 'scoped memory for two_branch_net.1']
    #allocation9 [shape = 'u8[65536]{0}', space=vmem, size = 0x10000, scoped, tag = 'input window, operand 10, single buffered']
    %17 = vsyncpa [#allocation3], 0
    %18 = vsyncpa [#allocation5], 0
    %19 = vsyncpa [#allocation8], 0
    // Predicated region
    $region2: #{two_branch_net.1} parent=1 // pred_check
      _
    $region3: #{two_branch_net.1} parent=1 // pred_check_branch
      %21 = sbr.rel (0) target = $region5
    $region4: #{two_branch_net.1} parent=1 // pred_region
      _
    $region5: #{two_branch_net.1} parent=1 // pred_fallthru
      _
    // Predicated region
    $region6: #{two_branch_net.1} parent=1 // pred_check
      _
    $region7: #{two_branch_net.1} parent=1 // pred_check_branch
      %23 = sbr.rel (0) target = $region9
    $region8: #{two_branch_net.1} parent=1 // pred_region
      _
    $region9: #{two_branch_net.1} parent=1 // pred_fallthru
      _
    // Predicated region
    $region10: #{two_branch_net.1} parent=1 // pred_check
      _
    $region11: #{two_branch_net.1} parent=1 // pred_check_branch
      %25 = sbr.rel (0) target = $region13
    $region12: #{two_branch_net.1} parent=1 // pred_region
      _
    $region13: #{two_branch_net.1} parent=1 // pred_fallthru
      _
    // Predicated region
    $region14: #{two_branch_net.1} parent=1 // pred_check
      _
    $region15: #{two_branch_net.1} parent=1 // pred_check_branch
      %27 = sbr.rel (0) target = $region17
    $region16: #{two_branch_net.1} parent=1 // pred_region
      _
    $region17: #{two_branch_net.1} parent=1 // pred_fallthru
      _
    // Predicated region
    $region18: #{two_branch_net.1} parent=1 // pred_check
      _
    $region19: #{two_branch_net.1} parent=1 // pred_check_branch
      %29 = sbr.rel (0) target = $region21
    $region20: #{two_branch_net.1} parent=1 // pred_region
      %31 = vsyncadd [#allocation3], 0
      %s32 = sshll.u32 %s4, 4
      %s33 = int_to_ptr.hbm [resolvable:$true] %s32
      %s34 = sshll.u32 [#allocation2], 4
      %s35 = int_to_ptr.vmem [resolvable:$true] %s34
      %40 = dma.hbm_to_vmem [thread:$0]  %s33, 2048, %s35, [#allocation3], 128, 128, 8
    $region21: #{two_branch_net.1} parent=1 // pred_fallthru
      _
    // Predicated region
    $region22: #{two_branch_net.1} parent=1 // pred_check
      _
    $region23: #{two_branch_net.1} parent=1 // pred_check_branch
      %42 = sbr.rel (0) target = $region25
    $region24: #{two_branch_net.1} parent=1 // pred_region
      _
    $region25: #{two_branch_net.1} parent=1 // pred_fallthru
      _
    // Predicated region
    $region26: #{two_branch_net.1} parent=1 // pred_check
      _
    $region27: #{two_branch_net.1} parent=1 // pred_check_branch
      %44 = sbr.rel (0) target = $region29
    $region28: #{two_branch_net.1} parent=1 // pred_region
      %46 = vsyncadd [#allocation5], 0
      %s47 = sshll.u32 %s6, 4
      %s48 = int_to_ptr.hbm [resolvable:$true] %s47
      %s49 = sshll.u32 [#allocation4], 4
      %s50 = int_to_ptr.vmem [resolvable:$true] %s49
      %55 = dma.hbm_to_vmem [thread:$0]  %s48, 2048, %s50, [#allocation5], 128, 128, 8
    $region29: #{two_branch_net.1} parent=1 // pred_fallthru
      _
    // Predicated region
    $region30: #{two_branch_net.1} parent=1 // pred_check
      _
    $region31: #{two_branch_net.1} parent=1 // pred_check_branch
      %57 = sbr.rel (0) target = $region33
    $region32: #{two_branch_net.1} parent=1 // pred_region
      _
    $region33: #{two_branch_net.1} parent=1 // pred_fallthru
      _
    // Predicated region
    $region34: #{two_branch_net.1} parent=1 // pred_check
      _
    $region35: #{two_branch_net.1} parent=1 // pred_check_branch
      %59 = sbr.rel (0) target = $region37
    $region36: #{two_branch_net.1} parent=1 // pred_region
      %61 = vsyncadd [#allocation5], 0
      %s62 = sshll.u32 %s8, 4
      %s63 = int_to_ptr.hbm [resolvable:$true] %s62
      %s64 = sshll.u32 [#allocation6], 4
      %s65 = int_to_ptr.vmem [resolvable:$true] %s64
      %70 = dma.hbm_to_vmem [thread:$0]  %s63, 2048, %s65, [#allocation5], 128, 128, 8
    $region37: #{two_branch_net.1} parent=1 // pred_fallthru
      _
    // Predicated region
    $region38: #{two_branch_net.1} parent=1 // pred_check
      _
    $region39: #{two_branch_net.1} parent=1 // pred_check_branch
      %72 = sbr.rel (0) target = $region41
    $region40: #{two_branch_net.1} parent=1 // pred_region
      %74 = vsyncadd [#allocation8], 0
      %s75 = sshll.u32 %s9, 4
      %s76 = int_to_ptr.hbm [resolvable:$true] %s75
      %s77 = sshll.u32 [#allocation7], 4
      %s78 = int_to_ptr.vmem [resolvable:$true] %s77
      %83 = dma.hbm_to_vmem [thread:$0]  %s76, 2048, %s78, [#allocation8], 128, 128, 8
    $region41: #{two_branch_net.1} parent=1 // pred_fallthru
      _
    // Predicated region
    $region42: #{two_branch_net.1} parent=1 // pred_check
      _
    $region43: #{two_branch_net.1} parent=1 // pred_check_branch
      %85 = sbr.rel (0) target = $region45
    $region44: #{two_branch_net.1} parent=1 // pred_region
      %87 = vsyncadd [#allocation8], 0
      %s88 = sshll.u32 %s10, 4
      %s89 = int_to_ptr.hbm [resolvable:$true] %s88
      %s90 = sshll.u32 [#allocation9], 4
      %s91 = int_to_ptr.vmem [resolvable:$true] %s90
      %96 = dma.hbm_to_vmem [thread:$0]  %s89, 2048, %s91, [#allocation8], 128, 128, 8
    $region45: #{two_branch_net.1} parent=1 // pred_fallthru
      _
    // Predicated region
    $region46: #{two_branch_net.1} parent=1 // pred_check
      _
    $region47: #{two_branch_net.1} parent=1 // pred_check_branch
      %98 = sbr.rel (0) target = $region49
    $region48: #{two_branch_net.1} parent=1 // pred_region
      _
    $region49: #{two_branch_net.1} parent=1 // pred_fallthru
      _
    // Predicated region
    $region50: #{two_branch_net.1} parent=1 // pred_check
      _
    $region51: #{two_branch_net.1} parent=1 // pred_check_branch
      %100 = sbr.rel (0) target = $region53
    $region52: #{two_branch_net.1} parent=1 // pred_region
      %102 = dma.done [#allocation3], 2048
    $region53: #{two_branch_net.1} parent=1 // pred_fallthru
      _
    // Predicated region
    $region54: #{two_branch_net.1} parent=1 // pred_check
      _
    $region55: #{two_branch_net.1} parent=1 // pred_check_branch
      %104 = sbr.rel (0) target = $region57
    $region56: #{two_branch_net.1} parent=1 // pred_region
      %106 = dma.done [#allocation5], 2048
    $region57: #{two_branch_net.1} parent=1 // pred_fallthru
      _
    // Predicated region
    $region58: #{two_branch_net.1} parent=1 // pred_check
      _
    $region59: #{two_branch_net.1} parent=1 // pred_check_branch
      %108 = sbr.rel (0) target = $region61
    $region60: #{two_branch_net.1} parent=1 // pred_region
      %110 = dma.done [#allocation5], 2048
    $region61: #{two_branch_net.1} parent=1 // pred_fallthru
      _
    // Predicated region
    $region62: #{two_branch_net.1} parent=1 // pred_check
      _
    $region63: #{two_branch_net.1} parent=1 // pred_check_branch
      %112 = sbr.rel (0) target = $region65
    $region64: #{two_branch_net.1} parent=1 // pred_region
      %114 = dma.done [#allocation8], 2048
    $region65: #{two_branch_net.1} parent=1 // pred_fallthru
      _
    // Predicated region
    $region66: #{two_branch_net.1} parent=1 // pred_check
      _
    $region67: #{two_branch_net.1} parent=1 // pred_check_branch
      %116 = sbr.rel (0) target = $region69
    $region68: #{two_branch_net.1} parent=1 // pred_region
      %118 = dma.done [#allocation8], 2048
    $region69: #{two_branch_net.1} parent=1 // pred_fallthru
      _
    %v119 = vld [vmem:[%s0] sm:$0xff]
    %v120 = vld [vmem:[%s1] sm:$0x1]
    %122 = vset.pattern.permute.xlu0 0
    %123 = vperm.xlu0 %122, %v119
    %v124 = vpop.permute.xlu0 %123
    %v127 = vperm.slane %v120, 0
    %v129 = vmul.f32 %v124, %v127
    %v130 = vld [vmem:[#allocation6] sm:$0xff]
    %v131 = vld [vmem:[#allocation6 + $0x8] sm:$0xff]
    %v132 = vld [vmem:[#allocation6 + $0x10] sm:$0xff]
    %v133 = vld [vmem:[#allocation6 + $0x18] sm:$0xff]
    %v134 = vld [vmem:[#allocation6 + $0x20] sm:$0xff]
    %v135 = vld [vmem:[#allocation6 + $0x28] sm:$0xff]
    %v136 = vld [vmem:[#allocation6 + $0x30] sm:$0xff]
    %v137 = vld [vmem:[#allocation6 + $0x38] sm:$0xff]
    %v138 = vld [vmem:[#allocation6 + $0x40] sm:$0xff]
    %v139 = vld [vmem:[#allocation6 + $0x48] sm:$0xff]
    %v140 = vld [vmem:[#allocation6 + $0x50] sm:$0xff]
    %v141 = vld [vmem:[#allocation6 + $0x58] sm:$0xff]
    %v142 = vld [vmem:[#allocation6 + $0x60] sm:$0xff]
    %v143 = vld [vmem:[#allocation6 + $0x68] sm:$0xff]
    %v144 = vld [vmem:[#allocation6 + $0x70] sm:$0xff]
    %v145 = vld [vmem:[#allocation6 + $0x78] sm:$0xff]
    %v146 = vld [vmem:[#allocation7] sm:$0xff]
    %v147 = vld [vmem:[#allocation7 + $0x8] sm:$0xff]
    %v148 = vld [vmem:[#allocation7 + $0x10] sm:$0xff]
    %v149 = vld [vmem:[#allocation7 + $0x18] sm:$0xff]
    %v150 = vld [vmem:[#allocation7 + $0x20] sm:$0xff]
    %v151 = vld [vmem:[#allocation7 + $0x28] sm:$0xff]
    %v152 = vld [vmem:[#allocation7 + $0x30] sm:$0xff]
    %v153 = vld [vmem:[#allocation7 + $0x38] sm:$0xff]
    %v154 = vld [vmem:[#allocation7 + $0x40] sm:$0xff]
    %v155 = vld [vmem:[#allocation7 + $0x48] sm:$0xff]
    %v156 = vld [vmem:[#allocation7 + $0x50] sm:$0xff]
    %v157 = vld [vmem:[#allocation7 + $0x58] sm:$0xff]
    %v158 = vld [vmem:[#allocation7 + $0x60] sm:$0xff]
    %v159 = vld [vmem:[#allocation7 + $0x68] sm:$0xff]
    %v160 = vld [vmem:[#allocation7 + $0x70] sm:$0xff]
    %v161 = vld [vmem:[#allocation7 + $0x78] sm:$0xff]
    %v162 = vand.u32 2147483647, %v129
    %vm163 = vcmp.le.f32.partialorder %v162, 0.7853982
    %vm164 = vcmp.lt.s32.totalorder %v129, 0
    %v165 = vand.u32 %v129, 2139095040
    %v166 = vshrl.u32 %v165, 23
    %v167 = vsub.s32 %v166, 127
    %v168 = vand.u32 2147483647, %v129
    %v169 = vand.u32 %v168, 8388607
    %v170 = vor.u32 %v169, 8388608
    %v171 = vsub.s32 0, %v170
    %v172 = vadd.s32 %v167, 1
    %vm173 = vcmp.gt.s32.totalorder %v172, 0
    %v174 = vsel %vm173, %v172, 0
    %v175 = vshrl.u32 %v174, 5
    %v176 = vand.u32 %v174, 31
    %v177 = vsub.s32 32, %v176
    %v178 = vshrl.u32 683565275, %v177
    %v179 = vshll.u32 683565275, %v176
    %v180 = vshrl.u32 2475754826, %v177
    %v181 = vor.u32 %v179, %v180
    %v182 = vshll.u32 2475754826, %v176
    %v183 = vshrl.u32 2131351028, %v177
    %v184 = vor.u32 %v182, %v183
    %v185 = vshll.u32 2131351028, %v176
    %v186 = vshrl.u32 2102212464, %v177
    %v187 = vor.u32 %v185, %v186
    %v188 = vshll.u32 2102212464, %v176
    %v189 = vshrl.u32 920167782, %v177
    %v190 = vor.u32 %v188, %v189
    %v191 = vshll.u32 920167782, %v176
    %v192 = vshrl.u32 1326507024, %v177
    %v193 = vor.u32 %v191, %v192
    %vm194 = vcmp.lt.s32.totalorder %v175, 1
    %vm195 = vcmp.lt.s32.totalorder %v175, 2
    %vm196 = vcmp.lt.s32.totalorder %v175, 3
    %vm197 = vcmp.lt.s32.totalorder %v175, 4
    %v198 = vsel %vm194, %v178, %v181
    %v199 = vsel %vm197, %v187, 2102212464
    %v200 = vsel %vm196, %v184, %v199
    %v201 = vsel %vm195, %v198, %v200
    %v202 = vsel %vm194, %v181, %v184
    %v203 = vsel %vm197, %v190, 920167782
    %v204 = vsel %vm196, %v187, %v203
    %v205 = vsel %vm195, %v202, %v204
    %v206 = vsel %vm194, %v184, %v187
    %v207 = vsel %vm197, %v193, 1326507024
    %v208 = vsel %vm196, %v190, %v207
    %v209 = vsel %vm195, %v206, %v208
    %v210 = vshll.u32 %v170, 8
    %v211 = vand.u32 %v210, 65535
    %v212 = vshrl.u32 %v210, 16
    %v213 = vand.u32 %v209, 65535
    %v214 = vshrl.u32 %v209, 16
    %v215 = vmul.u32 %v211, %v213
    %v216 = vmul.u32 %v211, %v214
    %v217 = vmul.u32 %v212, %v213
    %v218 = vmul.u32 %v212, %v214
    %v219 = vshll.u32 %v216, 16
    %v220 = vshrl.u32 %v216, 16
    %v221 = vshll.u32 %v217, 16
    %v222 = vshrl.u32 %v217, 16
    %vm223 = vc.u32 %v215, %v219
    %v224 = vsel %vm223, 1, 0
    %v225 = vadd.s32 %v215, %v219
    %v226 = vadd.s32 %v218, %v224
    %vm227 = vc.u32 %v225, %v221
    %v228 = vsel %vm227, 1, 0
    %v229 = vadd.s32 %v225, %v221
    %v230 = vadd.s32 %v226, %v228
    %v231 = vadd.s32 %v230, %v220
    %v232 = vadd.s32 %v231, %v222
    %v233 = vand.u32 %v210, 65535
    %v234 = vshrl.u32 %v210, 16
    %v235 = vand.u32 %v205, 65535
    %v236 = vshrl.u32 %v205, 16
    %v237 = vmul.u32 %v233, %v235
    %v238 = vmul.u32 %v233, %v236
    %v239 = vmul.u32 %v234, %v235
    %v240 = vmul.u32 %v234, %v236
    %v241 = vshll.u32 %v238, 16
    %v242 = vshrl.u32 %v238, 16
    %v243 = vshll.u32 %v239, 16
    %v244 = vshrl.u32 %v239, 16
    %vm245 = vc.u32 %v237, %v241
    %v246 = vsel %vm245, 1, 0
    %v247 = vadd.s32 %v237, %v241
    %v248 = vadd.s32 %v240, %v246
    %vm249 = vc.u32 %v247, %v243
    %v250 = vsel %vm249, 1, 0
    %v251 = vadd.s32 %v247, %v243
    %v252 = vadd.s32 %v248, %v250
    %v253 = vadd.s32 %v252, %v242
    %v254 = vadd.s32 %v253, %v244
    %v255 = vmul.u32 %v210, %v201
    %v256 = vadd.s32 %v232, %v251
    %vm257 = vc.u32 %v232, %v251
    %v258 = vadd.s32 %v254, 1
    %v259 = vsel %vm257, %v258, %v254
    %v260 = vadd.s32 %v255, %v259
    %v261 = vadd.s32 %v260, 536870912
    %v262 = vshrl.u32 %v261, 30
    %v263 = vshll.u32 %v262, 30
    %v264 = vsub.s32 %v260, %v263
    %vm265 = vcmp.lt.s32.totalorder %v264, 0
    %v266 = vsub.s32 0, %v264
    %v267 = vsel %vm265, %v266, %v264
    %v268 = vclz %v267
    %v269 = vsub.s32 %v268, 2
    %vm270 = vcmp.gt.s32.totalorder 0, %v269
    %v271 = vsel %vm270, 0, %v269
    %v272 = vsub.s32 32, %v271
    %v273 = vshll.u32 %v264, %v271
    %v274 = vshrl.u32 %v256, %v272
    %v275 = vor.u32 %v273, %v274
    %v276 = vsub.s32 4294967266, %v271
    %v277 = vadd.s32 %v276, 127
    %v278 = vshll.u32 %v277, 23
    %v279 = vor.u32 4788187, %v278
    %v280 = vand.u32 2147483647, %v279
    %v282 = vcvt.s32.f32 %v275
    %v283 = vmul.f32 %v282, %v280
    %v284 = vxor.u32 %v283, 2147483648
    %v285 = vsel %vm164, %v284, %v283
    %v286 = vsub.s32 4, %v262
    %v287 = vsel %vm164, %v286, %v262
    %v288 = vsel %vm163, %v129, %v285
    %v289 = vsel %vm163, 0, %v287
    %v290 = vmul.f32 %v288, %v288
    %v291 = vmul.f32 %v290, -0.001358992
    %v292 = vadd.f32 %v291, 0.041655596
    %v293 = vmul.f32 %v290, %v292
    %v294 = vadd.f32 %v293, -0.4999988
    %v295 = vmul.f32 %v290, %v294
    %v296 = vadd.f32 1.0, %v295
    %v297 = vmul.f32 %v288, %v288
    %v298 = vmul.f32 %v297, -0.00019511016
    %v299 = vadd.f32 %v298, 0.008332121
    %v300 = vmul.f32 %v297, %v299
    %v301 = vadd.f32 %v300, -0.16666654
    %v302 = vmul.f32 %v297, %v301
    %v303 = vadd.f32 %v302, 1.0
    %v304 = vmul.f32 %v303, %v288
    %vm305 = vweird.f32 %v129
    %v306 = vadd.s32 %v289, 3
    %v307 = vand.u32 %v306, 3
    %vm308 = vcmp.lt.s32.totalorder %v307, 2
    %vm309 = vcmp.eq.s32.totalorder %v307, 0
    %v310 = vxor.u32 %v304, 2147483648
    %v311 = vsel %vm309, %v296, %v310
    %vm312 = vcmp.eq.s32.totalorder %v307, 2
    %v313 = vxor.u32 %v296, 2147483648
    %v314 = vsel %vm312, %v313, %v304
    %v315 = vsel %vm308, %v311, %v314
    %v316 = vsel %vm305, nan, %v315
    %v317 = vand.u32 2147483647, %v129
    %vm318 = vcmp.le.f32.partialorder %v317, 0.7853982
    %vm319 = vcmp.lt.s32.totalorder %v129, 0
    %v320 = vand.u32 %v129, 2139095040
    %v321 = vshrl.u32 %v320, 23
    %v322 = vsub.s32 %v321, 127
    %v323 = vand.u32 2147483647, %v129
    %v324 = vand.u32 %v323, 8388607
    %v325 = vor.u32 %v324, 8388608
    %v326 = vsub.s32 0, %v325
    %v327 = vadd.s32 %v322, 1
    %vm328 = vcmp.gt.s32.totalorder %v327, 0
    %v329 = vsel %vm328, %v327, 0
    %v330 = vshrl.u32 %v329, 5
    %v331 = vand.u32 %v329, 31
    %v332 = vsub.s32 32, %v331
    %v333 = vshrl.u32 683565275, %v332
    %v334 = vshll.u32 683565275, %v331
    %v335 = vshrl.u32 2475754826, %v332
    %v336 = vor.u32 %v334, %v335
    %v337 = vshll.u32 2475754826, %v331
    %v338 = vshrl.u32 2131351028, %v332
    %v339 = vor.u32 %v337, %v338
    %v340 = vshll.u32 2131351028, %v331
    %v341 = vshrl.u32 2102212464, %v332
    %v342 = vor.u32 %v340, %v341
    %v343 = vshll.u32 2102212464, %v331
    %v344 = vshrl.u32 920167782, %v332
    %v345 = vor.u32 %v343, %v344
    %v346 = vshll.u32 920167782, %v331
    %v347 = vshrl.u32 1326507024, %v332
    %v348 = vor.u32 %v346, %v347
    %vm349 = vcmp.lt.s32.totalorder %v330, 1
    %vm350 = vcmp.lt.s32.totalorder %v330, 2
    %vm351 = vcmp.lt.s32.totalorder %v330, 3
    %vm352 = vcmp.lt.s32.totalorder %v330, 4
    %v353 = vsel %vm349, %v333, %v336
    %v354 = vsel %vm352, %v342, 2102212464
    %v355 = vsel %vm351, %v339, %v354
    %v356 = vsel %vm350, %v353, %v355
    %v357 = vsel %vm349, %v336, %v339
    %v358 = vsel %vm352, %v345, 920167782
    %v359 = vsel %vm351, %v342, %v358
    %v360 = vsel %vm350, %v357, %v359
    %v361 = vsel %vm349, %v339, %v342
    %v362 = vsel %vm352, %v348, 1326507024
    %v363 = vsel %vm351, %v345, %v362
    %v364 = vsel %vm350, %v361, %v363
    %v365 = vshll.u32 %v325, 8
    %v366 = vand.u32 %v365, 65535
    %v367 = vshrl.u32 %v365, 16
    %v368 = vand.u32 %v364, 65535
    %v369 = vshrl.u32 %v364, 16
    %v370 = vmul.u32 %v366, %v368
    %v371 = vmul.u32 %v366, %v369
    %v372 = vmul.u32 %v367, %v368
    %v373 = vmul.u32 %v367, %v369
    %v374 = vshll.u32 %v371, 16
    %v375 = vshrl.u32 %v371, 16
    %v376 = vshll.u32 %v372, 16
    %v377 = vshrl.u32 %v372, 16
    %vm378 = vc.u32 %v370, %v374
    %v379 = vsel %vm378, 1, 0
    %v380 = vadd.s32 %v370, %v374
    %v381 = vadd.s32 %v373, %v379
    %vm382 = vc.u32 %v380, %v376
    %v383 = vsel %vm382, 1, 0
    %v384 = vadd.s32 %v380, %v376
    %v385 = vadd.s32 %v381, %v383
    %v386 = vadd.s32 %v385, %v375
    %v387 = vadd.s32 %v386, %v377
    %v388 = vand.u32 %v365, 65535
    %v389 = vshrl.u32 %v365, 16
    %v390 = vand.u32 %v360, 65535
    %v391 = vshrl.u32 %v360, 16
    %v392 = vmul.u32 %v388, %v390
    %v393 = vmul.u32 %v388, %v391
    %v394 = vmul.u32 %v389, %v390
    %v395 = vmul.u32 %v389, %v391
    %v396 = vshll.u32 %v393, 16
    %v397 = vshrl.u32 %v393, 16
    %v398 = vshll.u32 %v394, 16
    %v399 = vshrl.u32 %v394, 16
    %vm400 = vc.u32 %v392, %v396
    %v401 = vsel %vm400, 1, 0
    %v402 = vadd.s32 %v392, %v396
    %v403 = vadd.s32 %v395, %v401
    %vm404 = vc.u32 %v402, %v398
    %v405 = vsel %vm404, 1, 0
    %v406 = vadd.s32 %v402, %v398
    %v407 = vadd.s32 %v403, %v405
    %v408 = vadd.s32 %v407, %v397
    %v409 = vadd.s32 %v408, %v399
    %v410 = vmul.u32 %v365, %v356
    %v411 = vadd.s32 %v387, %v406
    %vm412 = vc.u32 %v387, %v406
    %v413 = vadd.s32 %v409, 1
    %v414 = vsel %vm412, %v413, %v409
    %v415 = vadd.s32 %v410, %v414
    %v416 = vadd.s32 %v415, 536870912
    %v417 = vshrl.u32 %v416, 30
    %v418 = vshll.u32 %v417, 30
    %v419 = vsub.s32 %v415, %v418
    %vm420 = vcmp.lt.s32.totalorder %v419, 0
    %v421 = vsub.s32 0, %v419
    %v422 = vsel %vm420, %v421, %v419
    %v423 = vclz %v422
    %v424 = vsub.s32 %v423, 2
    %vm425 = vcmp.gt.s32.totalorder 0, %v424
    %v426 = vsel %vm425, 0, %v424
    %v427 = vsub.s32 32, %v426
    %v428 = vshll.u32 %v419, %v426
    %v429 = vshrl.u32 %v411, %v427
    %v430 = vor.u32 %v428, %v429
    %v431 = vsub.s32 4294967266, %v426
    %v432 = vadd.s32 %v431, 127
    %v433 = vshll.u32 %v432, 23
    %v434 = vor.u32 4788187, %v433
    %v435 = vand.u32 2147483647, %v434
    %v437 = vcvt.s32.f32 %v430
    %v438 = vmul.f32 %v437, %v435
    %v439 = vxor.u32 %v438, 2147483648
    %v440 = vsel %vm319, %v439, %v438
    %v441 = vsub.s32 4, %v417
    %v442 = vsel %vm319, %v441, %v417
    %v443 = vsel %vm318, %v129, %v440
    %v444 = vsel %vm318, 0, %v442
    %v445 = vmul.f32 %v443, %v443
    %v446 = vmul.f32 %v445, -0.001358992
    %v447 = vadd.f32 %v446, 0.041655596
    %v448 = vmul.f32 %v445, %v447
    %v449 = vadd.f32 %v448, -0.4999988
    %v450 = vmul.f32 %v445, %v449
    %v451 = vadd.f32 1.0, %v450
    %v452 = vmul.f32 %v443, %v443
    %v453 = vmul.f32 %v452, -0.00019511016
    %v454 = vadd.f32 %v453, 0.008332121
    %v455 = vmul.f32 %v452, %v454
    %v456 = vadd.f32 %v455, -0.16666654
    %v457 = vmul.f32 %v452, %v456
    %v458 = vadd.f32 %v457, 1.0
    %v459 = vmul.f32 %v458, %v443
    %vm460 = vweird.f32 %v129
    %v461 = vand.u32 %v444, 3
    %vm462 = vcmp.lt.s32.totalorder %v461, 2
    %vm463 = vcmp.eq.s32.totalorder %v461, 0
    %v464 = vxor.u32 %v459, 2147483648
    %v465 = vsel %vm463, %v451, %v464
    %vm466 = vcmp.eq.s32.totalorder %v461, 2
    %v467 = vxor.u32 %v451, 2147483648
    %v468 = vsel %vm466, %v467, %v459
    %v469 = vsel %vm462, %v465, %v468
    %v470 = vsel %vm460, nan, %v469
    %471 = vmatpush.msra.mxu0 %v161
    %472 = vmatpush.msra.mxu0 %v160
    %473 = vmatpush.msra.mxu0 %v159
    %474 = vmatpush.msra.mxu0 %v158
    %475 = vmatpush.msra.mxu0 %v157
    %476 = vmatpush.msra.mxu0 %v156
    %477 = vmatpush.msra.mxu0 %v155
    %478 = vmatpush.msra.mxu0 %v154
    %479 = vmatpush.msra.mxu0 %v153
    %480 = vmatpush.msra.mxu0 %v152
    %481 = vmatpush.msra.mxu0 %v151
    %482 = vmatpush.msra.mxu0 %v150
    %483 = vmatpush.msra.mxu0 %v149
    %484 = vmatpush.msra.mxu0 %v148
    %485 = vmatpush.msra.mxu0 %v147
    %486 = vmatpush.msra.mxu0 %v146
    %487 = vmatmul.f32.gmra.mxu0 %v470
    %v488 = vpop.f32.mrf.mxu0
    %v489 = vadd.f32 0.0, %v488
    %490 = vdwg.mxu0
    %491 = vmatpush.msra.mxu0 %v145
    %492 = vmatpush.msra.mxu0 %v144
    %493 = vmatpush.msra.mxu0 %v143
    %494 = vmatpush.msra.mxu0 %v142
    %495 = vmatpush.msra.mxu0 %v141
    %496 = vmatpush.msra.mxu0 %v140
    %497 = vmatpush.msra.mxu0 %v139
    %498 = vmatpush.msra.mxu0 %v138
    %499 = vmatpush.msra.mxu0 %v137
    %500 = vmatpush.msra.mxu0 %v136
    %501 = vmatpush.msra.mxu0 %v135
    %502 = vmatpush.msra.mxu0 %v134
    %503 = vmatpush.msra.mxu0 %v133
    %504 = vmatpush.msra.mxu0 %v132
    %505 = vmatpush.msra.mxu0 %v131
    %506 = vmatpush.msra.mxu0 %v130
    %507 = vmatmul.f32.gmra.mxu0 %v316
    %v508 = vpop.f32.mrf.mxu0
    %v509 = vadd.f32 %v489, %v508
    %510 = vdwg.mxu0
    %v511 = vld [vmem:[%s11] sm:$0x1]
    %v513 = vperm.slane %v511, 0
    %v515 = vadd.f32 %v509, %v513
    %v516 = vld [vmem:[%s2] sm:$0x1]
    %517 = vset.pattern.permute.xlu0 1
    %518 = vperm.xlu0 %517, %v119
    %v519 = vpop.permute.xlu0 %518
    %v522 = vperm.slane %v516, 0
    %v524 = vmul.f32 %v519, %v522
    %v525 = vld [vmem:[%s3] sm:$0x1]
    %v527 = vperm.slane %v525, 0
    %v529 = vadd.f32 %v524, %v527
    %v530 = vmax.f32 %v529, 0.0
    %v531 = vld [vmem:[#allocation2] sm:$0xff]
    %v532 = vld [vmem:[#allocation2 + $0x8] sm:$0xff]
    %v533 = vld [vmem:[#allocation2 + $0x10] sm:$0xff]
    %v534 = vld [vmem:[#allocation2 + $0x18] sm:$0xff]
    %v535 = vld [vmem:[#allocation2 + $0x20] sm:$0xff]
    %v536 = vld [vmem:[#allocation2 + $0x28] sm:$0xff]
    %v537 = vld [vmem:[#allocation2 + $0x30] sm:$0xff]
    %v538 = vld [vmem:[#allocation2 + $0x38] sm:$0xff]
    %v539 = vld [vmem:[#allocation2 + $0x40] sm:$0xff]
    %v540 = vld [vmem:[#allocation2 + $0x48] sm:$0xff]
    %v541 = vld [vmem:[#allocation2 + $0x50] sm:$0xff]
    %v542 = vld [vmem:[#allocation2 + $0x58] sm:$0xff]
    %v543 = vld [vmem:[#allocation2 + $0x60] sm:$0xff]
    %v544 = vld [vmem:[#allocation2 + $0x68] sm:$0xff]
    %v545 = vld [vmem:[#allocation2 + $0x70] sm:$0xff]
    %v546 = vld [vmem:[#allocation2 + $0x78] sm:$0xff]
    %v547 = vld [vmem:[%s5] sm:$0x1]
    %v549 = vperm.slane %v547, 0
    %551 = vmatpush.msra.mxu0 %v546
    %552 = vmatpush.msra.mxu0 %v545
    %553 = vmatpush.msra.mxu0 %v544
    %554 = vmatpush.msra.mxu0 %v543
    %555 = vmatpush.msra.mxu0 %v542
    %556 = vmatpush.msra.mxu0 %v541
    %557 = vmatpush.msra.mxu0 %v540
    %558 = vmatpush.msra.mxu0 %v539
    %559 = vmatpush.msra.mxu0 %v538
    %560 = vmatpush.msra.mxu0 %v537
    %561 = vmatpush.msra.mxu0 %v536
    %562 = vmatpush.msra.mxu0 %v535
    %563 = vmatpush.msra.mxu0 %v534
    %564 = vmatpush.msra.mxu0 %v533
    %565 = vmatpush.msra.mxu0 %v532
    %566 = vmatpush.msra.mxu0 %v531
    %567 = vmatmul.f32.gmra.mxu0 %v530
    %v568 = vpop.f32.mrf.mxu0
    %v569 = vadd.f32 %v549, %v568
    %570 = vdwg.mxu0
    %v571 = vmax.f32 %v569, 0.0
    %v572 = vld [vmem:[#allocation4] sm:$0xff]
    %v573 = vld [vmem:[#allocation4 + $0x8] sm:$0xff]
    %v574 = vld [vmem:[#allocation4 + $0x10] sm:$0xff]
    %v575 = vld [vmem:[#allocation4 + $0x18] sm:$0xff]
    %v576 = vld [vmem:[#allocation4 + $0x20] sm:$0xff]
    %v577 = vld [vmem:[#allocation4 + $0x28] sm:$0xff]
    %v578 = vld [vmem:[#allocation4 + $0x30] sm:$0xff]
    %v579 = vld [vmem:[#allocation4 + $0x38] sm:$0xff]
    %v580 = vld [vmem:[#allocation4 + $0x40] sm:$0xff]
    %v581 = vld [vmem:[#allocation4 + $0x48] sm:$0xff]
    %v582 = vld [vmem:[#allocation4 + $0x50] sm:$0xff]
    %v583 = vld [vmem:[#allocation4 + $0x58] sm:$0xff]
    %v584 = vld [vmem:[#allocation4 + $0x60] sm:$0xff]
    %v585 = vld [vmem:[#allocation4 + $0x68] sm:$0xff]
    %v586 = vld [vmem:[#allocation4 + $0x70] sm:$0xff]
    %v587 = vld [vmem:[#allocation4 + $0x78] sm:$0xff]
    %v588 = vld [vmem:[%s7] sm:$0x1]
    %v590 = vperm.slane %v588, 0
    %592 = vmatpush.msra.mxu0 %v587
    %593 = vmatpush.msra.mxu0 %v586
    %594 = vmatpush.msra.mxu0 %v585
    %595 = vmatpush.msra.mxu0 %v584
    %596 = vmatpush.msra.mxu0 %v583
    %597 = vmatpush.msra.mxu0 %v582
    %598 = vmatpush.msra.mxu0 %v581
    %599 = vmatpush.msra.mxu0 %v580
    %600 = vmatpush.msra.mxu0 %v579
    %601 = vmatpush.msra.mxu0 %v578
    %602 = vmatpush.msra.mxu0 %v577
    %603 = vmatpush.msra.mxu0 %v576
    %604 = vmatpush.msra.mxu0 %v575
    %605 = vmatpush.msra.mxu0 %v574
    %606 = vmatpush.msra.mxu0 %v573
    %607 = vmatpush.msra.mxu0 %v572
    %608 = vmatmul.f32.gmra.mxu0 %v571
    %v609 = vpop.f32.mrf.mxu0
    %v610 = vadd.f32 %v590, %v609
    %611 = vdwg.mxu0
    %v612 = vld [vmem:[#allocation9] sm:$0xff]
    %v613 = vld [vmem:[#allocation9 + $0x8] sm:$0xff]
    %v614 = vld [vmem:[#allocation9 + $0x10] sm:$0xff]
    %v615 = vld [vmem:[#allocation9 + $0x18] sm:$0xff]
    %v616 = vld [vmem:[#allocation9 + $0x20] sm:$0xff]
    %v617 = vld [vmem:[#allocation9 + $0x28] sm:$0xff]
    %v618 = vld [vmem:[#allocation9 + $0x30] sm:$0xff]
    %v619 = vld [vmem:[#allocation9 + $0x38] sm:$0xff]
    %v620 = vld [vmem:[#allocation9 + $0x40] sm:$0xff]
    %v621 = vld [vmem:[#allocation9 + $0x48] sm:$0xff]
    %v622 = vld [vmem:[#allocation9 + $0x50] sm:$0xff]
    %v623 = vld [vmem:[#allocation9 + $0x58] sm:$0xff]
    %v624 = vld [vmem:[#allocation9 + $0x60] sm:$0xff]
    %v625 = vld [vmem:[#allocation9 + $0x68] sm:$0xff]
    %v626 = vld [vmem:[#allocation9 + $0x70] sm:$0xff]
    %v627 = vld [vmem:[#allocation9 + $0x78] sm:$0xff]
    %628 = vmatpush.msra.mxu0 %v627
    %629 = vmatpush.msra.mxu0 %v626
    %630 = vmatpush.msra.mxu0 %v625
    %631 = vmatpush.msra.mxu0 %v624
    %632 = vmatpush.msra.mxu0 %v623
    %633 = vmatpush.msra.mxu0 %v622
    %634 = vmatpush.msra.mxu0 %v621
    %635 = vmatpush.msra.mxu0 %v620
    %636 = vmatpush.msra.mxu0 %v619
    %637 = vmatpush.msra.mxu0 %v618
    %638 = vmatpush.msra.mxu0 %v617
    %639 = vmatpush.msra.mxu0 %v616
    %640 = vmatpush.msra.mxu0 %v615
    %641 = vmatpush.msra.mxu0 %v614
    %642 = vmatpush.msra.mxu0 %v613
    %643 = vmatpush.msra.mxu0 %v612
    %644 = vmatmul.f32.gmra.mxu0 %v610
    %v645 = vpop.f32.mrf.mxu0
    %v646 = vadd.f32 0.0, %v645
    %647 = vdwg.mxu0
    %v648 = vadd.f32 %v515, %v646
    %v649 = vmax.f32 %v648, 0.0
    %650 = vst [vmem:[%s12] sm:$0xff] %v649
    // Predicated region
    $region70: #{two_branch_net.1} parent=1 // pred_check
      _
    $region71: #{two_branch_net.1} parent=1 // pred_check_branch
      %652 = sbr.rel (0) target = $region73
    $region72: #{two_branch_net.1} parent=1 // pred_region
      _
    $region73: #{two_branch_net.1} parent=1 // pred_fallthru
      _
    // Predicated region
    $region74: #{two_branch_net.1} parent=1 // pred_check
      _
    $region75: #{two_branch_net.1} parent=1 // pred_check_branch
      %654 = sbr.rel (0) target = $region77
    $region76: #{two_branch_net.1} parent=1 // pred_region
      _
    $region77: #{two_branch_net.1} parent=1 // pred_fallthru
      _
    %655 = vsyncpa [#allocation3], 1
    %656 = vsyncpa [#allocation5], 1
    %657 = vsyncpa [#allocation8], 1

</llo_original>
